<compile_context>
chip_gen: v7x
topology: tpu7x:2x2x1
jax: 0.10.0
libtpu: 0.0.40
codegen_flags: <defaults>
</compile_context>

<pallas_src>
import math

import jax
import jax.numpy as jnp
from jax.experimental import pallas as pl
from jax.experimental.pallas import tpu as pltpu

BN_EPS = 1e-5
LEAKY_SLOPE = 0.01
LANES = 128      # vreg lane width: feature dims and block_n padded to this


def _round_up(x, m):
    return ((x + m - 1) // m) * m


def autoencoder_kernel(x_ref, we_ref, be_ref, wd_ref, bd_ref, o_ref):
    # Dropout is identity in eval mode.
    # ----- encoder: Linear(D_in, H) with eval BN folded into we/be -----
    x = x_ref[...].astype(we_ref.dtype)        # cast in-kernel: one f32 HBM read
    h = jnp.dot(x, we_ref[...], preferred_element_type=jnp.float32)
    h = h + be_ref[...]
    # ----- LeakyReLU (f32 on the VPU; v5e-safe) -----
    h = jnp.where(h > 0, h, LEAKY_SLOPE * h)
    # ----- decoder: Linear(H, D_out); matmul dtype operands, f32 accumulation --
    z = jnp.dot(h.astype(wd_ref.dtype), wd_ref[...],
                preferred_element_type=jnp.float32)
    z = z + bd_ref[...]
    # ----- Sigmoid: exact via tanh (single EUP op + VPU fma) -----
    o_ref[...] = (0.5 * jnp.tanh(0.5 * z) + 0.5).astype(o_ref.dtype)


def prepare_params(params, *, matmul_dtype=jnp.float32):
    """Fold eval-mode BatchNorm into the encoder (in f32, then cast) and pad
    all feature dims to multiples of 128 lanes. One-time constant fold."""
    w_enc = params["w_enc"]          # [D_in, H]   (already transposed: x @ W)
    b_enc = params["b_enc"]          # [1, H]
    w_dec = params["w_dec"]          # [H, D_out]
    b_dec = params["b_dec"]          # [1, D_out]

    inv_std = 1.0 / jnp.sqrt(params["running_var"] + BN_EPS)      # [1, H]
    scale = params["gamma"] * inv_std                             # [1, H]
    w_enc_f = w_enc * scale                                       # fold BN scale
    b_enc_f = (b_enc - params["running_mean"]) * scale + params["beta"]

    d_in, h = w_enc.shape
    d_out = w_dec.shape[1]
    d_in_p = _round_up(d_in, LANES)
    h_p = _round_up(h, LANES)
    d_out_p = _round_up(d_out, LANES)

    def pad2(a, rows, cols):
        return jnp.pad(a, ((0, rows - a.shape[0]), (0, cols - a.shape[1])))

    return {
        # padded H columns have bias 0 -> LeakyReLU(0)=0 -> padded decoder rows
        # are 0, so padding never changes the valid outputs.
        "w_enc": pad2(w_enc_f, d_in_p, h_p).astype(matmul_dtype),   # [D_in_p, H_p]
        "b_enc": pad2(b_enc_f, 1, h_p).astype(jnp.float32),         # [1, H_p]
        "w_dec": pad2(w_dec, h_p, d_out_p).astype(matmul_dtype),    # [H_p, D_out_p]
        "b_dec": pad2(b_dec, 1, d_out_p).astype(jnp.float32),       # [1, D_out_p]
        "dims": (d_in, h, d_out),
    }


def _build_call(block_n, d_in_p, h_p, d_out_p, n_p, out_dtype, x_dtype,
                mm_dtype, single_buffer_weights):
    row_spec = lambda shape: pl.BlockSpec(shape, lambda i: (i, 0))
    if single_buffer_weights:
        # Constant-index blocks are never re-fetched -> single buffer (halves
        # their VMEM footprint, zero DMA cost).
        rep_spec = lambda shape: pl.BlockSpec(shape, lambda i: (0, 0),
                                              pipeline_mode=pl.Buffered(1))
    else:
        rep_spec = lambda shape: pl.BlockSpec(shape, lambda i: (0, 0))

    mm_bytes = jnp.dtype(mm_dtype).itemsize
    x_bytes = jnp.dtype(x_dtype).itemsize
    out_bytes = jnp.dtype(out_dtype).itemsize

    # Explicit VMEM budget (weights single-buffered, x/out double-buffered,
    # headroom for h/z intermediates). Keep under v7x's 64 MiB/TC.
    weight_bytes = (d_in_p * h_p + h_p * d_out_p) * mm_bytes \
        * (1 if single_buffer_weights else 2) + (h_p + d_out_p) * 4 * 2
    tile_bytes = 2 * block_n * d_in_p * x_bytes + 2 * block_n * d_out_p * out_bytes
    interm_bytes = block_n * (h_p + d_out_p) * 4
    vmem_limit = min(int(1.5 * (weight_bytes + tile_bytes + interm_bytes))
                     + (4 << 20), 100 << 20)

    cost = pl.CostEstimate(
        flops=2 * n_p * (d_in_p * h_p + h_p * d_out_p),
        transcendentals=n_p * d_out_p,                       # one tanh / element
        bytes_accessed=(n_p * d_in_p * x_bytes + n_p * d_out_p * out_bytes
                        + (d_in_p * h_p + h_p * d_out_p) * mm_bytes
                        + (h_p + d_out_p) * 4))

    # NOTE: both (padded) weight matrices are fully VMEM-resident. For very
    # large D_in/H/D_out, add a K/reduction grid axis with an f32 accumulator
    # scratch instead of keeping both weights resident (mind v7x's 64 MiB VMEM,
    # with each TensorCore holding its own copy under "parallel" sharding).
    return pl.pallas_call(
        autoencoder_kernel,
        out_shape=jax.ShapeDtypeStruct((n_p, d_out_p), out_dtype),
        grid_spec=pltpu.PrefetchScalarGridSpec(
            num_scalar_prefetch=0,
            grid=(n_p // block_n,),
            in_specs=[
                row_spec((block_n, d_in_p)),   # x tile (double-buffered)
                rep_spec((d_in_p, h_p)),       # folded encoder weight
                rep_spec((1, h_p)),            # folded encoder bias
                rep_spec((h_p, d_out_p)),      # decoder weight
                rep_spec((1, d_out_p)),        # decoder bias
            ],
            out_specs=row_spec((block_n, d_out_p)),
        ),
        compiler_params=pltpu.CompilerParams(
            dimension_semantics=("parallel",),
            vmem_limit_bytes=vmem_limit),
        cost_estimate=cost,
    )


def autoencoder_forward(x, prepared, *, block_n=512, out_dtype=jnp.float32):
    """x: [N, D_in] float32. prepared: output of prepare_params."""
    assert block_n % LANES == 0, "block_n must be a multiple of 128"
    n, d_in = x.shape
    d_in_orig, _, d_out = prepared["dims"]
    assert d_in == d_in_orig

    w_enc, b_enc = prepared["w_enc"], prepared["b_enc"]
    w_dec, b_dec = prepared["w_dec"], prepared["b_dec"]
    d_in_p, h_p = w_enc.shape
    d_out_p = w_dec.shape[1]

    # Keep x in its HBM dtype (cast happens in-kernel); only pad when needed.
    n_p = _round_up(max(n, 1), block_n)
    if (n_p, d_in_p) != (n, d_in):
        x_p = jnp.pad(x, ((0, n_p - n), (0, d_in_p - d_in)))
    else:
        x_p = x
    # TODO(synk): ragged N could be handled with a masked partial last tile
    # instead of pad+slice to remove the remaining wrapper-side HBM copies.

    args = (x_p, w_enc, b_enc, w_dec, b_dec)
    try:
        out = _build_call(block_n, d_in_p, h_p, d_out_p, n_p, out_dtype,
                          x_p.dtype, w_enc.dtype, True)(*args)
    except Exception:
        # Fallback if this JAX build rejects pl.Buffered(1) at pallas_call level.
        out = _build_call(block_n, d_in_p, h_p, d_out_p, n_p, out_dtype,
                          x_p.dtype, w_enc.dtype, False)(*args)

    if (n_p, d_out_p) != (n, d_out):
        out = out[:n, :d_out]
    return out


def xavier_uniform(key, shape):
    # shape = (fan_out, fan_in) as in PyTorch nn.Linear.weight
    fan_out, fan_in = shape
    bound = math.sqrt(6.0 / (fan_in + fan_out))
    return jax.random.uniform(key, shape, jnp.float32, -bound, bound)


def init_params(key, d_in, h, d_out):
    k1, k2, k3, k4 = jax.random.split(key, 4)
    # PyTorch Linear stores weight as [out, in]; transpose so kernel does x @ W.
    w_enc_pt = xavier_uniform(k1, (h, d_in))
    w_dec_pt = xavier_uniform(k2, (d_out, h))
    # Linear bias default init: U(-1/sqrt(fan_in), 1/sqrt(fan_in))
    b_enc = jax.random.uniform(k3, (1, h), jnp.float32,
                               -1.0 / math.sqrt(d_in), 1.0 / math.sqrt(d_in))
    b_dec = jax.random.uniform(k4, (1, d_out), jnp.float32,
                               -1.0 / math.sqrt(h), 1.0 / math.sqrt(h))
    return {
        "w_enc": jnp.asarray(w_enc_pt.T),          # [D_in, H]
        "b_enc": b_enc,                            # [1, H]
        "gamma": jnp.ones((1, h), jnp.float32),    # BN weight
        "beta": jnp.zeros((1, h), jnp.float32),    # BN bias
        "running_mean": jnp.zeros((1, h), jnp.float32),
        "running_var": jnp.ones((1, h), jnp.float32),
        "w_dec": jnp.asarray(w_dec_pt.T),          # [H, D_out]
        "b_dec": b_dec,                            # [1, D_out]
    }


def reference_forward(x, p):
    h = x @ p["w_enc"] + p["b_enc"]
    h = (h - p["running_mean"]) / jnp.sqrt(p["running_var"] + BN_EPS)
    h = h * p["gamma"] + p["beta"]
    h = jnp.where(h > 0, h, LEAKY_SLOPE * h)
    z = h @ p["w_dec"] + p["b_dec"]
    return jax.nn.sigmoid(z)


if __name__ == "__main__":
    N, D_IN, H, D_OUT = 16, 16, 32, 16
    key = jax.random.PRNGKey(0)
    kx, kp = jax.random.split(key)
    x = jax.random.normal(kx, (N, D_IN), jnp.float32)
    params = init_params(kp, D_IN, H, D_OUT)

    # Non-trivial BN running stats / affine so the constant fold is exercised.
    k5, k6, k7, k8 = jax.random.split(jax.random.PRNGKey(1), 4)
    params["running_mean"] = 0.1 * jax.random.normal(k5, (1, H), jnp.float32)
    params["running_var"] = jax.random.uniform(k6, (1, H), jnp.float32, 0.5, 1.5)
    params["gamma"] = jax.random.uniform(k7, (1, H), jnp.float32, 0.8, 1.2)
    params["beta"] = 0.1 * jax.random.normal(k8, (1, H), jnp.float32)

    ref = reference_forward(x, params)

    # f32 matmul operands, f32 output (exact sigmoid -> tight tolerance).
    prep_f32 = prepare_params(params, matmul_dtype=jnp.float32)
    out_f32 = jax.block_until_ready(
        autoencoder_forward(x, prep_f32, block_n=128))
    assert out_f32.shape == (N, D_OUT)
    assert jnp.max(jnp.abs(out_f32 - ref)) < 1e-4

    # bf16 matmul operands + f32 MXU accumulation (fast path on v5e/v6e/v7x).
    prep_bf16 = prepare_params(params, matmul_dtype=jnp.bfloat16)
    out_bf16 = jax.block_until_ready(
        autoencoder_forward(x, prep_bf16, block_n=128))
    assert out_bf16.shape == (N, D_OUT)
    assert jnp.max(jnp.abs(out_bf16 - ref)) < 5e-2

    print("KERNEL_OK")
</pallas_src>

<mosaic_0001>
module attributes {stable_mosaic.version = 11 : i64} {
  func.func @autoencoder_kernel(%arg0: i32, %arg1: memref<128x128xf32, #tpu.memory_space<vmem>>, %arg2: memref<128x128xf32, #tpu.memory_space<vmem>>, %arg3: memref<1x128xf32, #tpu.memory_space<vmem>>, %arg4: memref<128x128xf32, #tpu.memory_space<vmem>>, %arg5: memref<1x128xf32, #tpu.memory_space<vmem>>, %arg6: memref<128x128xf32, #tpu.memory_space<vmem>>) attributes {dimension_semantics = [#tpu.dimension_semantics<parallel>], iteration_bounds = array<i64: 1>, scalar_prefetch = 0 : i64, scratch_operands = 0 : i64, tpu.core_type = #tpu.core_type<tc>, window_params = [{transform_indices = @transform_0, window_bounds = array<i64: 128, 128>}, {pipeline_mode = #tpu.pipeline_mode<synchronous>, transform_indices = @transform_1, window_bounds = array<i64: 128, 128>}, {pipeline_mode = #tpu.pipeline_mode<synchronous>, transform_indices = @transform_2, window_bounds = array<i64: 1, 128>}, {pipeline_mode = #tpu.pipeline_mode<synchronous>, transform_indices = @transform_3, window_bounds = array<i64: 128, 128>}, {pipeline_mode = #tpu.pipeline_mode<synchronous>, transform_indices = @transform_4, window_bounds = array<i64: 1, 128>}, {transform_indices = @transform_5, window_bounds = array<i64: 128, 128>}]} {
    %c0 = arith.constant 0 : index
    %c0_0 = arith.constant 0 : index
    %0 = vector.load %arg1[%c0, %c0_0] : memref<128x128xf32, #tpu.memory_space<vmem>>, vector<128x128xf32>
    %c0_1 = arith.constant 0 : index
    %c0_2 = arith.constant 0 : index
    %1 = vector.load %arg2[%c0_1, %c0_2] : memref<128x128xf32, #tpu.memory_space<vmem>>, vector<128x128xf32>
    %cst = arith.constant dense<0.000000e+00> : vector<128x128xf32>
    %2 = tpu.matmul %0, %1, %cst {dimension_numbers = #tpu.dot_dimension_numbers<[1], [0], [0], [1], [0, 0, 1, 1], [], []>} : vector<128x128xf32>, vector<128x128xf32>, vector<128x128xf32> -> vector<128x128xf32>
    %c0_3 = arith.constant 0 : index
    %c0_4 = arith.constant 0 : index
    %3 = vector.load %arg3[%c0_3, %c0_4] : memref<1x128xf32, #tpu.memory_space<vmem>>, vector<1x128xf32>
    %4 = vector.broadcast %3 : vector<1x128xf32> to vector<128x128xf32>
    %5 = arith.addf %2, %4 : vector<128x128xf32>
    %cst_5 = arith.constant 0.000000e+00 : f32
    %6 = vector.broadcast %cst_5 : f32 to vector<128x128xf32>
    %7 = arith.cmpf ogt, %5, %6 : vector<128x128xf32>
    %cst_6 = arith.constant 0.00999999977 : f32
    %8 = vector.broadcast %cst_6 : f32 to vector<128x128xf32>
    %9 = arith.mulf %8, %5 : vector<128x128xf32>
    %10 = arith.select %7, %5, %9 : vector<128x128xi1>, vector<128x128xf32>
    %c0_7 = arith.constant 0 : index
    %c0_8 = arith.constant 0 : index
    %11 = vector.load %arg4[%c0_7, %c0_8] : memref<128x128xf32, #tpu.memory_space<vmem>>, vector<128x128xf32>
    %cst_9 = arith.constant dense<0.000000e+00> : vector<128x128xf32>
    %12 = tpu.matmul %10, %11, %cst_9 {dimension_numbers = #tpu.dot_dimension_numbers<[1], [0], [0], [1], [0, 0, 1, 1], [], []>} : vector<128x128xf32>, vector<128x128xf32>, vector<128x128xf32> -> vector<128x128xf32>
    %c0_10 = arith.constant 0 : index
    %c0_11 = arith.constant 0 : index
    %13 = vector.load %arg5[%c0_10, %c0_11] : memref<1x128xf32, #tpu.memory_space<vmem>>, vector<1x128xf32>
    %14 = vector.broadcast %13 : vector<1x128xf32> to vector<128x128xf32>
    %15 = arith.addf %12, %14 : vector<128x128xf32>
    %cst_12 = arith.constant 5.000000e-01 : f32
    %16 = vector.broadcast %cst_12 : f32 to vector<128x128xf32>
    %17 = arith.mulf %16, %15 : vector<128x128xf32>
    %18 = math.tanh %17 : vector<128x128xf32>
    %cst_13 = arith.constant 5.000000e-01 : f32
    %19 = vector.broadcast %cst_13 : f32 to vector<128x128xf32>
    %20 = arith.mulf %19, %18 : vector<128x128xf32>
    %cst_14 = arith.constant 5.000000e-01 : f32
    %21 = vector.broadcast %cst_14 : f32 to vector<128x128xf32>
    %22 = arith.addf %20, %21 : vector<128x128xf32>
    %c0_15 = arith.constant 0 : index
    %c0_16 = arith.constant 0 : index
    %23 = vector.load %arg6[%c0_15, %c0_16] : memref<128x128xf32, #tpu.memory_space<vmem>>, vector<128x128xf32>
    tpu.vector_store %arg6[%c0_15, %c0_16], %22 {strides = array<i32>} : memref<128x128xf32, #tpu.memory_space<vmem>>, vector<128x128xf32>,
    return
  }
  func.func @transform_0(%arg0: i32) -> (i32, i32) {
    %c0_i32 = arith.constant 0 : i32
    %c0_i32_0 = arith.constant 0 : i32
    return %arg0, %c0_i32 : i32, i32
  }
  func.func @transform_1(%arg0: i32) -> (i32, i32) {
    %c0_i32 = arith.constant 0 : i32
    %c0_i32_0 = arith.constant 0 : i32
    %c0_i32_1 = arith.constant 0 : i32
    return %c0_i32, %c0_i32_0 : i32, i32
  }
  func.func @transform_2(%arg0: i32) -> (i32, i32) {
    %c0_i32 = arith.constant 0 : i32
    %c0_i32_0 = arith.constant 0 : i32
    %c0_i32_1 = arith.constant 0 : i32
    return %c0_i32, %c0_i32_0 : i32, i32
  }
  func.func @transform_3(%arg0: i32) -> (i32, i32) {
    %c0_i32 = arith.constant 0 : i32
    %c0_i32_0 = arith.constant 0 : i32
    %c0_i32_1 = arith.constant 0 : i32
    return %c0_i32, %c0_i32_0 : i32, i32
  }
  func.func @transform_4(%arg0: i32) -> (i32, i32) {
    %c0_i32 = arith.constant 0 : i32
    %c0_i32_0 = arith.constant 0 : i32
    %c0_i32_1 = arith.constant 0 : i32
    return %c0_i32, %c0_i32_0 : i32, i32
  }
  func.func @transform_5(%arg0: i32) -> (i32, i32) {
    %c0_i32 = arith.constant 0 : i32
    %c0_i32_0 = arith.constant 0 : i32
    return %arg0, %c0_i32 : i32, i32
  }
}

module attributes {stable_mosaic.version = 11 : i64} {
  func.func @autoencoder_kernel(%arg0: i32, %arg1: memref<128x128xf32, #tpu.memory_space<vmem>>, %arg2: memref<128x128xf32, #tpu.memory_space<vmem>>, %arg3: memref<1x128xf32, #tpu.memory_space<vmem>>, %arg4: memref<128x128xf32, #tpu.memory_space<vmem>>, %arg5: memref<1x128xf32, #tpu.memory_space<vmem>>, %arg6: memref<128x128xf32, #tpu.memory_space<vmem>>) attributes {dimension_semantics = [#tpu.dimension_semantics<parallel>], iteration_bounds = array<i64: 1>, scalar_prefetch = 0 : i64, scratch_operands = 0 : i64, tpu.core_type = #tpu.core_type<tc>, window_params = [{transform_indices = @transform_0, window_bounds = array<i64: 128, 128>}, {pipeline_mode = #tpu.pipeline_mode<synchronous>, transform_indices = @transform_1, window_bounds = array<i64: 128, 128>}, {pipeline_mode = #tpu.pipeline_mode<synchronous>, transform_indices = @transform_2, window_bounds = array<i64: 1, 128>}, {pipeline_mode = #tpu.pipeline_mode<synchronous>, transform_indices = @transform_3, window_bounds = array<i64: 128, 128>}, {pipeline_mode = #tpu.pipeline_mode<synchronous>, transform_indices = @transform_4, window_bounds = array<i64: 1, 128>}, {transform_indices = @transform_5, window_bounds = array<i64: 128, 128>}]} {
    %c0 = arith.constant 0 : index
    %c0_0 = arith.constant 0 : index
    %0 = vector.load %arg1[%c0, %c0_0] : memref<128x128xf32, #tpu.memory_space<vmem>>, vector<128x128xf32>
    %c0_1 = arith.constant 0 : index
    %c0_2 = arith.constant 0 : index
    %1 = vector.load %arg2[%c0_1, %c0_2] : memref<128x128xf32, #tpu.memory_space<vmem>>, vector<128x128xf32>
    %cst = arith.constant dense<0.000000e+00> : vector<128x128xf32>
    %2 = tpu.matmul %0, %1, %cst {dimension_numbers = #tpu.dot_dimension_numbers<[1], [0], [0], [1], [0, 0, 1, 1], [], []>} : vector<128x128xf32>, vector<128x128xf32>, vector<128x128xf32> -> vector<128x128xf32>
    %c0_3 = arith.constant 0 : index
    %c0_4 = arith.constant 0 : index
    %3 = vector.load %arg3[%c0_3, %c0_4] : memref<1x128xf32, #tpu.memory_space<vmem>>, vector<1x128xf32>
    %4 = vector.broadcast %3 : vector<1x128xf32> to vector<128x128xf32>
    %5 = arith.addf %2, %4 : vector<128x128xf32>
    %cst_5 = arith.constant 0.000000e+00 : f32
    %6 = vector.broadcast %cst_5 : f32 to vector<128x128xf32>
    %7 = arith.cmpf ogt, %5, %6 : vector<128x128xf32>
    %cst_6 = arith.constant 0.00999999977 : f32
    %8 = vector.broadcast %cst_6 : f32 to vector<128x128xf32>
    %9 = arith.mulf %8, %5 : vector<128x128xf32>
    %10 = arith.select %7, %5, %9 : vector<128x128xi1>, vector<128x128xf32>
    %c0_7 = arith.constant 0 : index
    %c0_8 = arith.constant 0 : index
    %11 = vector.load %arg4[%c0_7, %c0_8] : memref<128x128xf32, #tpu.memory_space<vmem>>, vector<128x128xf32>
    %cst_9 = arith.constant dense<0.000000e+00> : vector<128x128xf32>
    %12 = tpu.matmul %10, %11, %cst_9 {dimension_numbers = #tpu.dot_dimension_numbers<[1], [0], [0], [1], [0, 0, 1, 1], [], []>} : vector<128x128xf32>, vector<128x128xf32>, vector<128x128xf32> -> vector<128x128xf32>
    %c0_10 = arith.constant 0 : index
    %c0_11 = arith.constant 0 : index
    %13 = vector.load %arg5[%c0_10, %c0_11] : memref<1x128xf32, #tpu.memory_space<vmem>>, vector<1x128xf32>
    %14 = vector.broadcast %13 : vector<1x128xf32> to vector<128x128xf32>
    %15 = arith.addf %12, %14 : vector<128x128xf32>
    %cst_12 = arith.constant 5.000000e-01 : f32
    %16 = vector.broadcast %cst_12 : f32 to vector<128x128xf32>
    %17 = arith.mulf %16, %15 : vector<128x128xf32>
    %18 = math.tanh %17 : vector<128x128xf32>
    %cst_13 = arith.constant 5.000000e-01 : f32
    %19 = vector.broadcast %cst_13 : f32 to vector<128x128xf32>
    %20 = arith.mulf %19, %18 : vector<128x128xf32>
    %cst_14 = arith.constant 5.000000e-01 : f32
    %21 = vector.broadcast %cst_14 : f32 to vector<128x128xf32>
    %22 = arith.addf %20, %21 : vector<128x128xf32>
    %c0_15 = arith.constant 0 : index
    %c0_16 = arith.constant 0 : index
    %23 = vector.load %arg6[%c0_15, %c0_16] : memref<128x128xf32, #tpu.memory_space<vmem>>, vector<128x128xf32>
    tpu.vector_store %arg6[%c0_15, %c0_16], %22 {strides = array<i32>} : memref<128x128xf32, #tpu.memory_space<vmem>>, vector<128x128xf32>,
    return
  }
  func.func @transform_0(%arg0: i32) -> (i32, i32) {
    %c0_i32 = arith.constant 0 : i32
    %c0_i32_0 = arith.constant 0 : i32
    return %arg0, %c0_i32 : i32, i32
  }
  func.func @transform_1(%arg0: i32) -> (i32, i32) {
    %c0_i32 = arith.constant 0 : i32
    %c0_i32_0 = arith.constant 0 : i32
    %c0_i32_1 = arith.constant 0 : i32
    return %c0_i32, %c0_i32_0 : i32, i32
  }
  func.func @transform_2(%arg0: i32) -> (i32, i32) {
    %c0_i32 = arith.constant 0 : i32
    %c0_i32_0 = arith.constant 0 : i32
    %c0_i32_1 = arith.constant 0 : i32
    return %c0_i32, %c0_i32_0 : i32, i32
  }
  func.func @transform_3(%arg0: i32) -> (i32, i32) {
    %c0_i32 = arith.constant 0 : i32
    %c0_i32_0 = arith.constant 0 : i32
    %c0_i32_1 = arith.constant 0 : i32
    return %c0_i32, %c0_i32_0 : i32, i32
  }
  func.func @transform_4(%arg0: i32) -> (i32, i32) {
    %c0_i32 = arith.constant 0 : i32
    %c0_i32_0 = arith.constant 0 : i32
    %c0_i32_1 = arith.constant 0 : i32
    return %c0_i32, %c0_i32_0 : i32, i32
  }
  func.func @transform_5(%arg0: i32) -> (i32, i32) {
    %c0_i32 = arith.constant 0 : i32
    %c0_i32_0 = arith.constant 0 : i32
    return %arg0, %c0_i32 : i32, i32
  }
}

</mosaic_0001>

<llo_original>
// kernel: tpu_custom_call.1
$region0: #{tpu_custom_call.1}
  #allocation0 [shape = 'u32[]', space=smem, size = 0x4, offset = 0x4, fixed_abs, tag = 'smem constant byte address 0x4 - core index']
  #allocation1 [shape = 'u32[144,128]{1,0:T(1,128)}', space=vmem, size = 0x12000, scoped, tag = 'internal scratch']
  %s0 = inlined_call_operand.hbm [shape: f32[128,128], index: 0, kind: input, shape index: {}]
  %s1 = inlined_call_operand.hbm [shape: f32[128,128], index: 1, kind: input, shape index: {}]
  %s2 = inlined_call_operand.vmem [shape: f32[1,128], index: 2, kind: input, shape index: {}]
  %s3 = inlined_call_operand.hbm [shape: f32[128,128], index: 3, kind: input, shape index: {}]
  %s4 = inlined_call_operand.vmem [shape: f32[1,128], index: 4, kind: input, shape index: {}]
  %s5 = inlined_call_operand.hbm [shape: f32[128,128], index: 5, kind: output, shape index: {}]
  %s6 = sld [smem:[#allocation0]]
  $region42: #{tpu_custom_call.1} parent=0
    _
  %s8 = ssub.s32 1, %s6
  %s9 = scalar_select 0, %s8, %s6
  $region1: #{tpu_custom_call.1} parent=0
    #allocation2 [shape = 'u8[65536]{0}', space=vmem, size = 0x10000, scoped, tag = 'input window, operand 0, single buffered']
    #allocation3 [shape = 's32[1]{0}', space=sflag, size = 0x4, scoped, tag = 'scoped memory for tpu_custom_call.1']
    #allocation4 [shape = 's32[1]{0}', space=sflag, size = 0x4, scoped, tag = 'scoped memory for tpu_custom_call.1']
    #allocation5 [shape = 'u8[65536]{0}', space=vmem, size = 0x10000, scoped, tag = 'input window, operand 1, single buffered']
    #allocation6 [shape = 's32[1]{0}', space=sflag, size = 0x4, scoped, tag = 'scoped memory for tpu_custom_call.1']
    #allocation7 [shape = 'u8[65536]{0}', space=vmem, size = 0x10000, scoped, tag = 'input window, operand 3, single buffered']
    #allocation8 [shape = 'u8[65536]{0}', space=vmem, size = 0x10000, scoped, tag = 'output window, operand 0, single buffered']
    %10 = vsyncpa [#allocation3], 0
    %11 = vsyncpa [#allocation6], 0
    %12 = vsyncpa [#allocation4], 0
    // Predicated region
    $region2: #{tpu_custom_call.1} parent=1 // pred_check
      _
    $region3: #{tpu_custom_call.1} parent=1 // pred_check_branch
      %14 = sbr.rel (0) target = $region5
    $region4: #{tpu_custom_call.1} parent=1 // pred_region
      %s16 = ssub.s32 2048, 2048
      %17 = vsyncadd [#allocation3], %s16
      %s18 = sshll.u32 [#allocation2], 4
      %s19 = int_to_ptr.vmem [resolvable:$true] %s18
      %24 = dma.hbm_to_vmem [thread:$0]  %s0, 2048, %s19, [#allocation3], 128, 128, 8
    $region5: #{tpu_custom_call.1} parent=1 // pred_fallthru
      _
    // Predicated region
    $region6: #{tpu_custom_call.1} parent=1 // pred_check
      _
    $region7: #{tpu_custom_call.1} parent=1 // pred_check_branch
      %26 = sbr.rel (0) target = $region9
    $region8: #{tpu_custom_call.1} parent=1 // pred_region
      %s28 = ssub.s32 2048, 2048
      %29 = vsyncadd [#allocation6], %s28
      %s30 = sshll.u32 [#allocation5], 4
      %s31 = int_to_ptr.vmem [resolvable:$true] %s30
      %36 = dma.hbm_to_vmem [thread:$0]  %s1, 2048, %s31, [#allocation6], 128, 128, 8
    $region9: #{tpu_custom_call.1} parent=1 // pred_fallthru
      _
    // Predicated region
    $region10: #{tpu_custom_call.1} parent=1 // pred_check
      _
    $region11: #{tpu_custom_call.1} parent=1 // pred_check_branch
      %38 = sbr.rel (0) target = $region13
    $region12: #{tpu_custom_call.1} parent=1 // pred_region
      _
    $region13: #{tpu_custom_call.1} parent=1 // pred_fallthru
      _
    // Predicated region
    $region14: #{tpu_custom_call.1} parent=1 // pred_check
      _
    $region15: #{tpu_custom_call.1} parent=1 // pred_check_branch
      %40 = sbr.rel (0) target = $region17
    $region16: #{tpu_custom_call.1} parent=1 // pred_region
      %s42 = ssub.s32 2048, 2048
      %43 = vsyncadd [#allocation6], %s42
      %s44 = sshll.u32 [#allocation7], 4
      %s45 = int_to_ptr.vmem [resolvable:$true] %s44
      %50 = dma.hbm_to_vmem [thread:$0]  %s3, 2048, %s45, [#allocation6], 128, 128, 8
    $region17: #{tpu_custom_call.1} parent=1 // pred_fallthru
      _
    // Predicated region
    $region18: #{tpu_custom_call.1} parent=1 // pred_check
      _
    $region19: #{tpu_custom_call.1} parent=1 // pred_check_branch
      %52 = sbr.rel (0) target = $region21
    $region20: #{tpu_custom_call.1} parent=1 // pred_region
      _
    $region21: #{tpu_custom_call.1} parent=1 // pred_fallthru
      _
    // Predicated region
    $region22: #{tpu_custom_call.1} parent=1 // pred_check
      _
    $region23: #{tpu_custom_call.1} parent=1 // pred_check_branch
      %54 = sbr.rel (0) target = $region25
    $region24: #{tpu_custom_call.1} parent=1 // pred_region
      %55 = dma.done [#allocation3], 2048
    $region25: #{tpu_custom_call.1} parent=1 // pred_fallthru
      _
    // Predicated region
    $region26: #{tpu_custom_call.1} parent=1 // pred_check
      _
    $region27: #{tpu_custom_call.1} parent=1 // pred_check_branch
      %57 = sbr.rel (0) target = $region29
    $region28: #{tpu_custom_call.1} parent=1 // pred_region
      %58 = dma.done [#allocation6], 2048
    $region29: #{tpu_custom_call.1} parent=1 // pred_fallthru
      _
    // Predicated region
    $region30: #{tpu_custom_call.1} parent=1 // pred_check
      _
    $region31: #{tpu_custom_call.1} parent=1 // pred_check_branch
      %60 = sbr.rel (0) target = $region33
    $region32: #{tpu_custom_call.1} parent=1 // pred_region
      %61 = dma.done [#allocation6], 2048
    $region33: #{tpu_custom_call.1} parent=1 // pred_fallthru
      _
    %v62 = vld [vmem:[#allocation2] sm:$0xff]
    %v63 = vld [vmem:[#allocation2 + $0x8] sm:$0xff]
    %v64 = vld [vmem:[#allocation2 + $0x10] sm:$0xff]
    %v65 = vld [vmem:[#allocation2 + $0x18] sm:$0xff]
    %v66 = vld [vmem:[#allocation2 + $0x20] sm:$0xff]
    %v67 = vld [vmem:[#allocation2 + $0x28] sm:$0xff]
    %v68 = vld [vmem:[#allocation2 + $0x30] sm:$0xff]
    %v69 = vld [vmem:[#allocation2 + $0x38] sm:$0xff]
    %v70 = vld [vmem:[#allocation2 + $0x40] sm:$0xff]
    %v71 = vld [vmem:[#allocation2 + $0x48] sm:$0xff]
    %v72 = vld [vmem:[#allocation2 + $0x50] sm:$0xff]
    %v73 = vld [vmem:[#allocation2 + $0x58] sm:$0xff]
    %v74 = vld [vmem:[#allocation2 + $0x60] sm:$0xff]
    %v75 = vld [vmem:[#allocation2 + $0x68] sm:$0xff]
    %v76 = vld [vmem:[#allocation2 + $0x70] sm:$0xff]
    %v77 = vld [vmem:[#allocation2 + $0x78] sm:$0xff]
    %v78 = vld [vmem:[#allocation5] sm:$0xff]
    %v79 = vld [vmem:[#allocation5 + $0x8] sm:$0xff]
    %v80 = vld [vmem:[#allocation5 + $0x10] sm:$0xff]
    %v81 = vld [vmem:[#allocation5 + $0x18] sm:$0xff]
    %v82 = vld [vmem:[#allocation5 + $0x20] sm:$0xff]
    %v83 = vld [vmem:[#allocation5 + $0x28] sm:$0xff]
    %v84 = vld [vmem:[#allocation5 + $0x30] sm:$0xff]
    %v85 = vld [vmem:[#allocation5 + $0x38] sm:$0xff]
    %v86 = vld [vmem:[#allocation5 + $0x40] sm:$0xff]
    %v87 = vld [vmem:[#allocation5 + $0x48] sm:$0xff]
    %v88 = vld [vmem:[#allocation5 + $0x50] sm:$0xff]
    %v89 = vld [vmem:[#allocation5 + $0x58] sm:$0xff]
    %v90 = vld [vmem:[#allocation5 + $0x60] sm:$0xff]
    %v91 = vld [vmem:[#allocation5 + $0x68] sm:$0xff]
    %v92 = vld [vmem:[#allocation5 + $0x70] sm:$0xff]
    %v93 = vld [vmem:[#allocation5 + $0x78] sm:$0xff]
    %v94 = vld [vmem:[%s2] sm:$0x1]
    %v96 = vlaneseq
    %v97 = vshrl.u32 %v96, 7
    %v98 = vsub.s32 0, %v97
    %v99 = vrot.slane %v94, %v98
    %101 = vmatprep.subr.mxu0 0.0
    %102 = vmatpush1.msra.mxu0 %v78
    %103 = vmatprep.subr.mxu0 0.0
    %104 = vmatpush1.msra.mxu0 %v79
    %105 = vmatprep.subr.mxu0 0.0
    %106 = vmatpush1.msra.mxu0 %v80
    %107 = vmatprep.subr.mxu0 0.0
    %108 = vmatpush1.msra.mxu0 %v81
    %109 = vmatprep.subr.mxu0 0.0
    %110 = vmatpush1.msra.mxu0 %v82
    %111 = vmatprep.subr.mxu0 0.0
    %112 = vmatpush1.msra.mxu0 %v83
    %113 = vmatprep.subr.mxu0 0.0
    %114 = vmatpush1.msra.mxu0 %v84
    %115 = vmatprep.subr.mxu0 0.0
    %116 = vmatpush1.msra.mxu0 %v85
    %117 = vmatprep.subr.mxu0 0.0
    %118 = vmatpush1.msra.mxu0 %v86
    %119 = vmatprep.subr.mxu0 0.0
    %120 = vmatpush1.msra.mxu0 %v87
    %121 = vmatprep.subr.mxu0 0.0
    %122 = vmatpush1.msra.mxu0 %v88
    %123 = vmatprep.subr.mxu0 0.0
    %124 = vmatpush1.msra.mxu0 %v89
    %125 = vmatprep.subr.mxu0 0.0
    %126 = vmatpush1.msra.mxu0 %v90
    %127 = vmatprep.subr.mxu0 0.0
    %128 = vmatpush1.msra.mxu0 %v91
    %129 = vmatprep.subr.mxu0 0.0
    %130 = vmatpush1.msra.mxu0 %v92
    %131 = vmatprep.subr.mxu0 0.0
    %132 = vmatpush1.msra.mxu0 %v93
    %133 = vmatprep.subr.mxu0 0.0
    %134 = vmatpush1.msra.mxu0 0.0
    %135 = vmatprep.subr.mxu0 0.0
    %136 = vmatpush1.msra.mxu0 0.0
    %137 = vmatprep.subr.mxu0 0.0
    %138 = vmatpush1.msra.mxu0 0.0
    %139 = vmatprep.subr.mxu0 0.0
    %140 = vmatpush1.msra.mxu0 0.0
    %141 = vmatprep.subr.mxu0 0.0
    %142 = vmatpush1.msra.mxu0 0.0
    %143 = vmatprep.subr.mxu0 0.0
    %144 = vmatpush1.msra.mxu0 0.0
    %145 = vmatprep.subr.mxu0 0.0
    %146 = vmatpush1.msra.mxu0 0.0
    %147 = vmatprep.subr.mxu0 0.0
    %148 = vmatpush1.msra.mxu0 0.0
    %149 = vmatprep.subr.mxu0 0.0
    %150 = vmatpush1.msra.mxu0 0.0
    %151 = vmatprep.subr.mxu0 0.0
    %152 = vmatpush1.msra.mxu0 0.0
    %153 = vmatprep.subr.mxu0 0.0
    %154 = vmatpush1.msra.mxu0 0.0
    %155 = vmatprep.subr.mxu0 0.0
    %156 = vmatpush1.msra.mxu0 0.0
    %157 = vmatprep.subr.mxu0 0.0
    %158 = vmatpush1.msra.mxu0 0.0
    %159 = vmatprep.subr.mxu0 0.0
    %160 = vmatpush1.msra.mxu0 0.0
    %161 = vmatprep.subr.mxu0 0.0
    %162 = vmatpush1.msra.mxu0 0.0
    %163 = vmatprep.subr.mxu0 0.0
    %164 = vmatpush1.msra.mxu0 0.0
    %165 = vmatprep.mubr.f32.mxu0 0.0
    %166 = vmatmul.mubr.f32.gmra.mrb[0].mxu0 %v62
    %v167 = vpop.f32.mrb[0].mxu0
    %v168 = vadd.f32 %v99, %v167
    %v169 = vpop.f32.mrb[0].mxu0
    %170 = vmatprep.mubr.f32.mxu0 0.0
    %171 = vmatmul.mubr.f32.gmra.mrb[0].mxu0 %v63
    %v172 = vpop.f32.mrb[0].mxu0
    %v173 = vadd.f32 %v99, %v172
    %v174 = vpop.f32.mrb[0].mxu0
    %175 = vmatprep.mubr.f32.mxu0 0.0
    %176 = vmatmul.mubr.f32.gmra.mrb[0].mxu0 %v64
    %v177 = vpop.f32.mrb[0].mxu0
    %v178 = vadd.f32 %v99, %v177
    %v179 = vpop.f32.mrb[0].mxu0
    %180 = vmatprep.mubr.f32.mxu0 0.0
    %181 = vmatmul.mubr.f32.gmra.mrb[0].mxu0 %v65
    %v182 = vpop.f32.mrb[0].mxu0
    %v183 = vadd.f32 %v99, %v182
    %v184 = vpop.f32.mrb[0].mxu0
    %185 = vmatprep.mubr.f32.mxu0 0.0
    %186 = vmatmul.mubr.f32.gmra.mrb[0].mxu0 %v66
    %v187 = vpop.f32.mrb[0].mxu0
    %v188 = vadd.f32 %v99, %v187
    %v189 = vpop.f32.mrb[0].mxu0
    %190 = vmatprep.mubr.f32.mxu0 0.0
    %191 = vmatmul.mubr.f32.gmra.mrb[0].mxu0 %v67
    %v192 = vpop.f32.mrb[0].mxu0
    %v193 = vadd.f32 %v99, %v192
    %v194 = vpop.f32.mrb[0].mxu0
    %195 = vmatprep.mubr.f32.mxu0 0.0
    %196 = vmatmul.mubr.f32.gmra.mrb[0].mxu0 %v68
    %v197 = vpop.f32.mrb[0].mxu0
    %v198 = vadd.f32 %v99, %v197
    %v199 = vpop.f32.mrb[0].mxu0
    %200 = vmatprep.mubr.f32.mxu0 0.0
    %201 = vmatmul.mubr.f32.gmra.mrb[0].mxu0 %v69
    %v202 = vpop.f32.mrb[0].mxu0
    %v203 = vadd.f32 %v99, %v202
    %v204 = vpop.f32.mrb[0].mxu0
    %205 = vmatprep.mubr.f32.mxu0 0.0
    %206 = vmatmul.mubr.f32.gmra.mrb[0].mxu0 %v70
    %v207 = vpop.f32.mrb[0].mxu0
    %v208 = vadd.f32 %v99, %v207
    %v209 = vpop.f32.mrb[0].mxu0
    %210 = vmatprep.mubr.f32.mxu0 0.0
    %211 = vmatmul.mubr.f32.gmra.mrb[0].mxu0 %v71
    %v212 = vpop.f32.mrb[0].mxu0
    %v213 = vadd.f32 %v99, %v212
    %v214 = vpop.f32.mrb[0].mxu0
    %215 = vmatprep.mubr.f32.mxu0 0.0
    %216 = vmatmul.mubr.f32.gmra.mrb[0].mxu0 %v72
    %v217 = vpop.f32.mrb[0].mxu0
    %v218 = vadd.f32 %v99, %v217
    %v219 = vpop.f32.mrb[0].mxu0
    %220 = vmatprep.mubr.f32.mxu0 0.0
    %221 = vmatmul.mubr.f32.gmra.mrb[0].mxu0 %v73
    %v222 = vpop.f32.mrb[0].mxu0
    %v223 = vadd.f32 %v99, %v222
    %v224 = vpop.f32.mrb[0].mxu0
    %225 = vmatprep.mubr.f32.mxu0 0.0
    %226 = vmatmul.mubr.f32.gmra.mrb[0].mxu0 %v74
    %v227 = vpop.f32.mrb[0].mxu0
    %v228 = vadd.f32 %v99, %v227
    %v229 = vpop.f32.mrb[0].mxu0
    %230 = vmatprep.mubr.f32.mxu0 0.0
    %231 = vmatmul.mubr.f32.gmra.mrb[0].mxu0 %v75
    %v232 = vpop.f32.mrb[0].mxu0
    %v233 = vadd.f32 %v99, %v232
    %v234 = vpop.f32.mrb[0].mxu0
    %235 = vmatprep.mubr.f32.mxu0 0.0
    %236 = vmatmul.mubr.f32.gmra.mrb[0].mxu0 %v76
    %v237 = vpop.f32.mrb[0].mxu0
    %v238 = vadd.f32 %v99, %v237
    %v239 = vpop.f32.mrb[0].mxu0
    %240 = vmatprep.mubr.f32.mxu0 0.0
    %241 = vmatmul.mubr.f32.gmra.mrb[0].mxu0 %v77
    %v242 = vpop.f32.mrb[0].mxu0
    %v243 = vadd.f32 %v99, %v242
    %v244 = vpop.f32.mrb[0].mxu0
    %245 = vdwg.mxu0
    %vm246 = vcmp.gt.f32.partialorder %v168, 0.0
    %vm247 = vcmp.gt.f32.partialorder %v173, 0.0
    %vm248 = vcmp.gt.f32.partialorder %v178, 0.0
    %vm249 = vcmp.gt.f32.partialorder %v183, 0.0
    %vm250 = vcmp.gt.f32.partialorder %v188, 0.0
    %vm251 = vcmp.gt.f32.partialorder %v193, 0.0
    %vm252 = vcmp.gt.f32.partialorder %v198, 0.0
    %vm253 = vcmp.gt.f32.partialorder %v203, 0.0
    %vm254 = vcmp.gt.f32.partialorder %v208, 0.0
    %vm255 = vcmp.gt.f32.partialorder %v213, 0.0
    %vm256 = vcmp.gt.f32.partialorder %v218, 0.0
    %vm257 = vcmp.gt.f32.partialorder %v223, 0.0
    %vm258 = vcmp.gt.f32.partialorder %v228, 0.0
    %vm259 = vcmp.gt.f32.partialorder %v233, 0.0
    %vm260 = vcmp.gt.f32.partialorder %v238, 0.0
    %vm261 = vcmp.gt.f32.partialorder %v243, 0.0
    %v262 = vmul.f32 %v168, 0.01
    %v263 = vmul.f32 %v173, 0.01
    %v264 = vmul.f32 %v178, 0.01
    %v265 = vmul.f32 %v183, 0.01
    %v266 = vmul.f32 %v188, 0.01
    %v267 = vmul.f32 %v193, 0.01
    %v268 = vmul.f32 %v198, 0.01
    %v269 = vmul.f32 %v203, 0.01
    %v270 = vmul.f32 %v208, 0.01
    %v271 = vmul.f32 %v213, 0.01
    %v272 = vmul.f32 %v218, 0.01
    %v273 = vmul.f32 %v223, 0.01
    %v274 = vmul.f32 %v228, 0.01
    %v275 = vmul.f32 %v233, 0.01
    %v276 = vmul.f32 %v238, 0.01
    %v277 = vmul.f32 %v243, 0.01
    %v278 = vsel %vm246, %v168, %v262
    %v279 = vsel %vm247, %v173, %v263
    %v280 = vsel %vm248, %v178, %v264
    %v281 = vsel %vm249, %v183, %v265
    %v282 = vsel %vm250, %v188, %v266
    %v283 = vsel %vm251, %v193, %v267
    %v284 = vsel %vm252, %v198, %v268
    %v285 = vsel %vm253, %v203, %v269
    %v286 = vsel %vm254, %v208, %v270
    %v287 = vsel %vm255, %v213, %v271
    %v288 = vsel %vm256, %v218, %v272
    %v289 = vsel %vm257, %v223, %v273
    %v290 = vsel %vm258, %v228, %v274
    %v291 = vsel %vm259, %v233, %v275
    %v292 = vsel %vm260, %v238, %v276
    %v293 = vsel %vm261, %v243, %v277
    %v294 = vld [vmem:[#allocation7] sm:$0xff]
    %v295 = vld [vmem:[#allocation7 + $0x8] sm:$0xff]
    %v296 = vld [vmem:[#allocation7 + $0x10] sm:$0xff]
    %v297 = vld [vmem:[#allocation7 + $0x18] sm:$0xff]
    %v298 = vld [vmem:[#allocation7 + $0x20] sm:$0xff]
    %v299 = vld [vmem:[#allocation7 + $0x28] sm:$0xff]
    %v300 = vld [vmem:[#allocation7 + $0x30] sm:$0xff]
    %v301 = vld [vmem:[#allocation7 + $0x38] sm:$0xff]
    %v302 = vld [vmem:[#allocation7 + $0x40] sm:$0xff]
    %v303 = vld [vmem:[#allocation7 + $0x48] sm:$0xff]
    %v304 = vld [vmem:[#allocation7 + $0x50] sm:$0xff]
    %v305 = vld [vmem:[#allocation7 + $0x58] sm:$0xff]
    %v306 = vld [vmem:[#allocation7 + $0x60] sm:$0xff]
    %v307 = vld [vmem:[#allocation7 + $0x68] sm:$0xff]
    %v308 = vld [vmem:[#allocation7 + $0x70] sm:$0xff]
    %v309 = vld [vmem:[#allocation7 + $0x78] sm:$0xff]
    %v310 = vld [vmem:[%s4] sm:$0x1]
    %v312 = vlaneseq
    %v313 = vshrl.u32 %v312, 7
    %v314 = vsub.s32 0, %v313
    %v315 = vrot.slane %v310, %v314
    %317 = vmatprep.subr.mxu0 0.0
    %318 = vmatpush1.msra.mxu0 %v294
    %319 = vmatprep.subr.mxu0 0.0
    %320 = vmatpush1.msra.mxu0 %v295
    %321 = vmatprep.subr.mxu0 0.0
    %322 = vmatpush1.msra.mxu0 %v296
    %323 = vmatprep.subr.mxu0 0.0
    %324 = vmatpush1.msra.mxu0 %v297
    %325 = vmatprep.subr.mxu0 0.0
    %326 = vmatpush1.msra.mxu0 %v298
    %327 = vmatprep.subr.mxu0 0.0
    %328 = vmatpush1.msra.mxu0 %v299
    %329 = vmatprep.subr.mxu0 0.0
    %330 = vmatpush1.msra.mxu0 %v300
    %331 = vmatprep.subr.mxu0 0.0
    %332 = vmatpush1.msra.mxu0 %v301
    %333 = vmatprep.subr.mxu0 0.0
    %334 = vmatpush1.msra.mxu0 %v302
    %335 = vmatprep.subr.mxu0 0.0
    %336 = vmatpush1.msra.mxu0 %v303
    %337 = vmatprep.subr.mxu0 0.0
    %338 = vmatpush1.msra.mxu0 %v304
    %339 = vmatprep.subr.mxu0 0.0
    %340 = vmatpush1.msra.mxu0 %v305
    %341 = vmatprep.subr.mxu0 0.0
    %342 = vmatpush1.msra.mxu0 %v306
    %343 = vmatprep.subr.mxu0 0.0
    %344 = vmatpush1.msra.mxu0 %v307
    %345 = vmatprep.subr.mxu0 0.0
    %346 = vmatpush1.msra.mxu0 %v308
    %347 = vmatprep.subr.mxu0 0.0
    %348 = vmatpush1.msra.mxu0 %v309
    %349 = vmatprep.subr.mxu0 0.0
    %350 = vmatpush1.msra.mxu0 0.0
    %351 = vmatprep.subr.mxu0 0.0
    %352 = vmatpush1.msra.mxu0 0.0
    %353 = vmatprep.subr.mxu0 0.0
    %354 = vmatpush1.msra.mxu0 0.0
    %355 = vmatprep.subr.mxu0 0.0
    %356 = vmatpush1.msra.mxu0 0.0
    %357 = vmatprep.subr.mxu0 0.0
    %358 = vmatpush1.msra.mxu0 0.0
    %359 = vmatprep.subr.mxu0 0.0
    %360 = vmatpush1.msra.mxu0 0.0
    %361 = vmatprep.subr.mxu0 0.0
    %362 = vmatpush1.msra.mxu0 0.0
    %363 = vmatprep.subr.mxu0 0.0
    %364 = vmatpush1.msra.mxu0 0.0
    %365 = vmatprep.subr.mxu0 0.0
    %366 = vmatpush1.msra.mxu0 0.0
    %367 = vmatprep.subr.mxu0 0.0
    %368 = vmatpush1.msra.mxu0 0.0
    %369 = vmatprep.subr.mxu0 0.0
    %370 = vmatpush1.msra.mxu0 0.0
    %371 = vmatprep.subr.mxu0 0.0
    %372 = vmatpush1.msra.mxu0 0.0
    %373 = vmatprep.subr.mxu0 0.0
    %374 = vmatpush1.msra.mxu0 0.0
    %375 = vmatprep.subr.mxu0 0.0
    %376 = vmatpush1.msra.mxu0 0.0
    %377 = vmatprep.subr.mxu0 0.0
    %378 = vmatpush1.msra.mxu0 0.0
    %379 = vmatprep.subr.mxu0 0.0
    %380 = vmatpush1.msra.mxu0 0.0
    %381 = vmatprep.mubr.f32.mxu0 0.0
    %382 = vmatmul.mubr.f32.gmra.mrb[0].mxu0 %v278
    %v383 = vpop.f32.mrb[0].mxu0
    %v384 = vadd.f32 %v315, %v383
    %v385 = vpop.f32.mrb[0].mxu0
    %386 = vmatprep.mubr.f32.mxu0 0.0
    %387 = vmatmul.mubr.f32.gmra.mrb[0].mxu0 %v279
    %v388 = vpop.f32.mrb[0].mxu0
    %v389 = vadd.f32 %v315, %v388
    %v390 = vpop.f32.mrb[0].mxu0
    %391 = vmatprep.mubr.f32.mxu0 0.0
    %392 = vmatmul.mubr.f32.gmra.mrb[0].mxu0 %v280
    %v393 = vpop.f32.mrb[0].mxu0
    %v394 = vadd.f32 %v315, %v393
    %v395 = vpop.f32.mrb[0].mxu0
    %396 = vmatprep.mubr.f32.mxu0 0.0
    %397 = vmatmul.mubr.f32.gmra.mrb[0].mxu0 %v281
    %v398 = vpop.f32.mrb[0].mxu0
    %v399 = vadd.f32 %v315, %v398
    %v400 = vpop.f32.mrb[0].mxu0
    %401 = vmatprep.mubr.f32.mxu0 0.0
    %402 = vmatmul.mubr.f32.gmra.mrb[0].mxu0 %v282
    %v403 = vpop.f32.mrb[0].mxu0
    %v404 = vadd.f32 %v315, %v403
    %v405 = vpop.f32.mrb[0].mxu0
    %406 = vmatprep.mubr.f32.mxu0 0.0
    %407 = vmatmul.mubr.f32.gmra.mrb[0].mxu0 %v283
    %v408 = vpop.f32.mrb[0].mxu0
    %v409 = vadd.f32 %v315, %v408
    %v410 = vpop.f32.mrb[0].mxu0
    %411 = vmatprep.mubr.f32.mxu0 0.0
    %412 = vmatmul.mubr.f32.gmra.mrb[0].mxu0 %v284
    %v413 = vpop.f32.mrb[0].mxu0
    %v414 = vadd.f32 %v315, %v413
    %v415 = vpop.f32.mrb[0].mxu0
    %416 = vmatprep.mubr.f32.mxu0 0.0
    %417 = vmatmul.mubr.f32.gmra.mrb[0].mxu0 %v285
    %v418 = vpop.f32.mrb[0].mxu0
    %v419 = vadd.f32 %v315, %v418
    %v420 = vpop.f32.mrb[0].mxu0
    %421 = vmatprep.mubr.f32.mxu0 0.0
    %422 = vmatmul.mubr.f32.gmra.mrb[0].mxu0 %v286
    %v423 = vpop.f32.mrb[0].mxu0
    %v424 = vadd.f32 %v315, %v423
    %v425 = vpop.f32.mrb[0].mxu0
    %426 = vmatprep.mubr.f32.mxu0 0.0
    %427 = vmatmul.mubr.f32.gmra.mrb[0].mxu0 %v287
    %v428 = vpop.f32.mrb[0].mxu0
    %v429 = vadd.f32 %v315, %v428
    %v430 = vpop.f32.mrb[0].mxu0
    %431 = vmatprep.mubr.f32.mxu0 0.0
    %432 = vmatmul.mubr.f32.gmra.mrb[0].mxu0 %v288
    %v433 = vpop.f32.mrb[0].mxu0
    %v434 = vadd.f32 %v315, %v433
    %v435 = vpop.f32.mrb[0].mxu0
    %436 = vmatprep.mubr.f32.mxu0 0.0
    %437 = vmatmul.mubr.f32.gmra.mrb[0].mxu0 %v289
    %v438 = vpop.f32.mrb[0].mxu0
    %v439 = vadd.f32 %v315, %v438
    %v440 = vpop.f32.mrb[0].mxu0
    %441 = vmatprep.mubr.f32.mxu0 0.0
    %442 = vmatmul.mubr.f32.gmra.mrb[0].mxu0 %v290
    %v443 = vpop.f32.mrb[0].mxu0
    %v444 = vadd.f32 %v315, %v443
    %v445 = vpop.f32.mrb[0].mxu0
    %446 = vmatprep.mubr.f32.mxu0 0.0
    %447 = vmatmul.mubr.f32.gmra.mrb[0].mxu0 %v291
    %v448 = vpop.f32.mrb[0].mxu0
    %v449 = vadd.f32 %v315, %v448
    %v450 = vpop.f32.mrb[0].mxu0
    %451 = vmatprep.mubr.f32.mxu0 0.0
    %452 = vmatmul.mubr.f32.gmra.mrb[0].mxu0 %v292
    %v453 = vpop.f32.mrb[0].mxu0
    %v454 = vadd.f32 %v315, %v453
    %v455 = vpop.f32.mrb[0].mxu0
    %456 = vmatprep.mubr.f32.mxu0 0.0
    %457 = vmatmul.mubr.f32.gmra.mrb[0].mxu0 %v293
    %v458 = vpop.f32.mrb[0].mxu0
    %v459 = vadd.f32 %v315, %v458
    %v460 = vpop.f32.mrb[0].mxu0
    %461 = vdwg.mxu0
    %v462 = vmul.f32 %v384, 0.5
    %v463 = vmul.f32 %v389, 0.5
    %v464 = vmul.f32 %v394, 0.5
    %v465 = vmul.f32 %v399, 0.5
    %v466 = vmul.f32 %v404, 0.5
    %v467 = vmul.f32 %v409, 0.5
    %v468 = vmul.f32 %v414, 0.5
    %v469 = vmul.f32 %v419, 0.5
    %v470 = vmul.f32 %v424, 0.5
    %v471 = vmul.f32 %v429, 0.5
    %v472 = vmul.f32 %v434, 0.5
    %v473 = vmul.f32 %v439, 0.5
    %v474 = vmul.f32 %v444, 0.5
    %v475 = vmul.f32 %v449, 0.5
    %v476 = vmul.f32 %v454, 0.5
    %v477 = vmul.f32 %v459, 0.5
    %v478 = vtanh.pop %v462
    %v479 = vtanh.pop %v463
    %v480 = vtanh.pop %v464
    %v481 = vtanh.pop %v465
    %v482 = vtanh.pop %v466
    %v483 = vtanh.pop %v467
    %v484 = vtanh.pop %v468
    %v485 = vtanh.pop %v469
    %v486 = vtanh.pop %v470
    %v487 = vtanh.pop %v471
    %v488 = vtanh.pop %v472
    %v489 = vtanh.pop %v473
    %v490 = vtanh.pop %v474
    %v491 = vtanh.pop %v475
    %v492 = vtanh.pop %v476
    %v493 = vtanh.pop %v477
    %v494 = vmul.f32 %v478, 0.5
    %v495 = vmul.f32 %v479, 0.5
    %v496 = vmul.f32 %v480, 0.5
    %v497 = vmul.f32 %v481, 0.5
    %v498 = vmul.f32 %v482, 0.5
    %v499 = vmul.f32 %v483, 0.5
    %v500 = vmul.f32 %v484, 0.5
    %v501 = vmul.f32 %v485, 0.5
    %v502 = vmul.f32 %v486, 0.5
    %v503 = vmul.f32 %v487, 0.5
    %v504 = vmul.f32 %v488, 0.5
    %v505 = vmul.f32 %v489, 0.5
    %v506 = vmul.f32 %v490, 0.5
    %v507 = vmul.f32 %v491, 0.5
    %v508 = vmul.f32 %v492, 0.5
    %v509 = vmul.f32 %v493, 0.5
    %v510 = vadd.f32 %v494, 0.5
    %v511 = vadd.f32 %v495, 0.5
    %v512 = vadd.f32 %v496, 0.5
    %v513 = vadd.f32 %v497, 0.5
    %v514 = vadd.f32 %v498, 0.5
    %v515 = vadd.f32 %v499, 0.5
    %v516 = vadd.f32 %v500, 0.5
    %v517 = vadd.f32 %v501, 0.5
    %v518 = vadd.f32 %v502, 0.5
    %v519 = vadd.f32 %v503, 0.5
    %v520 = vadd.f32 %v504, 0.5
    %v521 = vadd.f32 %v505, 0.5
    %v522 = vadd.f32 %v506, 0.5
    %v523 = vadd.f32 %v507, 0.5
    %v524 = vadd.f32 %v508, 0.5
    %v525 = vadd.f32 %v509, 0.5
    %526 = vst [vmem:[#allocation8] sm:$0xff] %v510
    %527 = vst [vmem:[#allocation8 + $0x8] sm:$0xff] %v511
    %528 = vst [vmem:[#allocation8 + $0x10] sm:$0xff] %v512
    %529 = vst [vmem:[#allocation8 + $0x18] sm:$0xff] %v513
    %530 = vst [vmem:[#allocation8 + $0x20] sm:$0xff] %v514
    %531 = vst [vmem:[#allocation8 + $0x28] sm:$0xff] %v515
    %532 = vst [vmem:[#allocation8 + $0x30] sm:$0xff] %v516
    %533 = vst [vmem:[#allocation8 + $0x38] sm:$0xff] %v517
    %534 = vst [vmem:[#allocation8 + $0x40] sm:$0xff] %v518
    %535 = vst [vmem:[#allocation8 + $0x48] sm:$0xff] %v519
    %536 = vst [vmem:[#allocation8 + $0x50] sm:$0xff] %v520
    %537 = vst [vmem:[#allocation8 + $0x58] sm:$0xff] %v521
    %538 = vst [vmem:[#allocation8 + $0x60] sm:$0xff] %v522
    %539 = vst [vmem:[#allocation8 + $0x68] sm:$0xff] %v523
    %540 = vst [vmem:[#allocation8 + $0x70] sm:$0xff] %v524
    %541 = vst [vmem:[#allocation8 + $0x78] sm:$0xff] %v525
    // Predicated region
    $region34: #{tpu_custom_call.1} parent=1 // pred_check
      _
    $region35: #{tpu_custom_call.1} parent=1 // pred_check_branch
      %543 = sbr.rel (0) target = $region37
    $region36: #{tpu_custom_call.1} parent=1 // pred_region
      %s545 = ssub.s32 2048, 2048
      %546 = vsyncadd [#allocation4], %s545
      %s547 = sshll.u32 [#allocation8], 4
      %s548 = int_to_ptr.vmem [resolvable:$true] %s547
      %553 = dma.vmem_to_hbm [thread:$0]  %s548, 2048, %s5, [#allocation4], 128, 128, 8
    $region37: #{tpu_custom_call.1} parent=1 // pred_fallthru
      _
    // Predicated region
    $region38: #{tpu_custom_call.1} parent=1 // pred_check
      _
    $region39: #{tpu_custom_call.1} parent=1 // pred_check_branch
      %555 = sbr.rel (0) target = $region41
    $region40: #{tpu_custom_call.1} parent=1 // pred_region
      %556 = dma.done [#allocation4], 2048
    $region41: #{tpu_custom_call.1} parent=1 // pred_fallthru
      _
    %557 = vsyncpa [#allocation3], 1
    %558 = vsyncpa [#allocation6], 1
    %559 = vsyncpa [#allocation4], 1

// kernel: tpu_custom_call.1
$region0: #{tpu_custom_call.1}
  #allocation0 [shape = 'u32[]', space=smem, size = 0x4, offset = 0x4, fixed_abs, tag = 'smem constant byte address 0x4 - core index']
  #allocation1 [shape = 'u32[144,128]{1,0:T(1,128)}', space=vmem, size = 0x12000, scoped, tag = 'internal scratch']
  %s0 = inlined_call_operand.hbm [shape: f32[128,128], index: 0, kind: input, shape index: {}]
  %s1 = inlined_call_operand.hbm [shape: f32[128,128], index: 1, kind: input, shape index: {}]
  %s2 = inlined_call_operand.vmem [shape: f32[1,128], index: 2, kind: input, shape index: {}]
  %s3 = inlined_call_operand.hbm [shape: f32[128,128], index: 3, kind: input, shape index: {}]
  %s4 = inlined_call_operand.vmem [shape: f32[1,128], index: 4, kind: input, shape index: {}]
  %s5 = inlined_call_operand.hbm [shape: f32[128,128], index: 5, kind: output, shape index: {}]
  %s6 = sld [smem:[#allocation0]]
  $region42: #{tpu_custom_call.1} parent=0
    _
  %s8 = ssub.s32 1, %s6
  %s9 = scalar_select 0, %s8, %s6
  $region1: #{tpu_custom_call.1} parent=0
    #allocation2 [shape = 'u8[65536]{0}', space=vmem, size = 0x10000, scoped, tag = 'input window, operand 0, single buffered']
    #allocation3 [shape = 's32[1]{0}', space=sflag, size = 0x4, scoped, tag = 'scoped memory for tpu_custom_call.1']
    #allocation4 [shape = 's32[1]{0}', space=sflag, size = 0x4, scoped, tag = 'scoped memory for tpu_custom_call.1']
    #allocation5 [shape = 'u8[65536]{0}', space=vmem, size = 0x10000, scoped, tag = 'input window, operand 1, single buffered']
    #allocation6 [shape = 's32[1]{0}', space=sflag, size = 0x4, scoped, tag = 'scoped memory for tpu_custom_call.1']
    #allocation7 [shape = 'u8[65536]{0}', space=vmem, size = 0x10000, scoped, tag = 'input window, operand 3, single buffered']
    #allocation8 [shape = 'u8[65536]{0}', space=vmem, size = 0x10000, scoped, tag = 'output window, operand 0, single buffered']
    %10 = vsyncpa [#allocation3], 0
    %11 = vsyncpa [#allocation6], 0
    %12 = vsyncpa [#allocation4], 0
    // Predicated region
    $region2: #{tpu_custom_call.1} parent=1 // pred_check
      _
    $region3: #{tpu_custom_call.1} parent=1 // pred_check_branch
      %14 = sbr.rel (0) target = $region5
    $region4: #{tpu_custom_call.1} parent=1 // pred_region
      %s16 = ssub.s32 2048, 2048
      %17 = vsyncadd [#allocation3], %s16
      %s18 = sshll.u32 [#allocation2], 4
      %s19 = int_to_ptr.vmem [resolvable:$true] %s18
      %24 = dma.hbm_to_vmem [thread:$0]  %s0, 2048, %s19, [#allocation3], 128, 128, 8
    $region5: #{tpu_custom_call.1} parent=1 // pred_fallthru
      _
    // Predicated region
    $region6: #{tpu_custom_call.1} parent=1 // pred_check
      _
    $region7: #{tpu_custom_call.1} parent=1 // pred_check_branch
      %26 = sbr.rel (0) target = $region9
    $region8: #{tpu_custom_call.1} parent=1 // pred_region
      %s28 = ssub.s32 2048, 2048
      %29 = vsyncadd [#allocation6], %s28
      %s30 = sshll.u32 [#allocation5], 4
      %s31 = int_to_ptr.vmem [resolvable:$true] %s30
      %36 = dma.hbm_to_vmem [thread:$0]  %s1, 2048, %s31, [#allocation6], 128, 128, 8
    $region9: #{tpu_custom_call.1} parent=1 // pred_fallthru
      _
    // Predicated region
    $region10: #{tpu_custom_call.1} parent=1 // pred_check
      _
    $region11: #{tpu_custom_call.1} parent=1 // pred_check_branch
      %38 = sbr.rel (0) target = $region13
    $region12: #{tpu_custom_call.1} parent=1 // pred_region
      _
    $region13: #{tpu_custom_call.1} parent=1 // pred_fallthru
      _
    // Predicated region
    $region14: #{tpu_custom_call.1} parent=1 // pred_check
      _
    $region15: #{tpu_custom_call.1} parent=1 // pred_check_branch
      %40 = sbr.rel (0) target = $region17
    $region16: #{tpu_custom_call.1} parent=1 // pred_region
      %s42 = ssub.s32 2048, 2048
      %43 = vsyncadd [#allocation6], %s42
      %s44 = sshll.u32 [#allocation7], 4
      %s45 = int_to_ptr.vmem [resolvable:$true] %s44
      %50 = dma.hbm_to_vmem [thread:$0]  %s3, 2048, %s45, [#allocation6], 128, 128, 8
    $region17: #{tpu_custom_call.1} parent=1 // pred_fallthru
      _
    // Predicated region
    $region18: #{tpu_custom_call.1} parent=1 // pred_check
      _
    $region19: #{tpu_custom_call.1} parent=1 // pred_check_branch
      %52 = sbr.rel (0) target = $region21
    $region20: #{tpu_custom_call.1} parent=1 // pred_region
      _
    $region21: #{tpu_custom_call.1} parent=1 // pred_fallthru
      _
    // Predicated region
    $region22: #{tpu_custom_call.1} parent=1 // pred_check
      _
    $region23: #{tpu_custom_call.1} parent=1 // pred_check_branch
      %54 = sbr.rel (0) target = $region25
    $region24: #{tpu_custom_call.1} parent=1 // pred_region
      %55 = dma.done [#allocation3], 2048
    $region25: #{tpu_custom_call.1} parent=1 // pred_fallthru
      _
    // Predicated region
    $region26: #{tpu_custom_call.1} parent=1 // pred_check
      _
    $region27: #{tpu_custom_call.1} parent=1 // pred_check_branch
      %57 = sbr.rel (0) target = $region29
    $region28: #{tpu_custom_call.1} parent=1 // pred_region
      %58 = dma.done [#allocation6], 2048
    $region29: #{tpu_custom_call.1} parent=1 // pred_fallthru
      _
    // Predicated region
    $region30: #{tpu_custom_call.1} parent=1 // pred_check
      _
    $region31: #{tpu_custom_call.1} parent=1 // pred_check_branch
      %60 = sbr.rel (0) target = $region33
    $region32: #{tpu_custom_call.1} parent=1 // pred_region
      %61 = dma.done [#allocation6], 2048
    $region33: #{tpu_custom_call.1} parent=1 // pred_fallthru
      _
    %v62 = vld [vmem:[#allocation2] sm:$0xff]
    %v63 = vld [vmem:[#allocation2 + $0x8] sm:$0xff]
    %v64 = vld [vmem:[#allocation2 + $0x10] sm:$0xff]
    %v65 = vld [vmem:[#allocation2 + $0x18] sm:$0xff]
    %v66 = vld [vmem:[#allocation2 + $0x20] sm:$0xff]
    %v67 = vld [vmem:[#allocation2 + $0x28] sm:$0xff]
    %v68 = vld [vmem:[#allocation2 + $0x30] sm:$0xff]
    %v69 = vld [vmem:[#allocation2 + $0x38] sm:$0xff]
    %v70 = vld [vmem:[#allocation2 + $0x40] sm:$0xff]
    %v71 = vld [vmem:[#allocation2 + $0x48] sm:$0xff]
    %v72 = vld [vmem:[#allocation2 + $0x50] sm:$0xff]
    %v73 = vld [vmem:[#allocation2 + $0x58] sm:$0xff]
    %v74 = vld [vmem:[#allocation2 + $0x60] sm:$0xff]
    %v75 = vld [vmem:[#allocation2 + $0x68] sm:$0xff]
    %v76 = vld [vmem:[#allocation2 + $0x70] sm:$0xff]
    %v77 = vld [vmem:[#allocation2 + $0x78] sm:$0xff]
    %v78 = vld [vmem:[#allocation5] sm:$0xff]
    %v79 = vld [vmem:[#allocation5 + $0x8] sm:$0xff]
    %v80 = vld [vmem:[#allocation5 + $0x10] sm:$0xff]
    %v81 = vld [vmem:[#allocation5 + $0x18] sm:$0xff]
    %v82 = vld [vmem:[#allocation5 + $0x20] sm:$0xff]
    %v83 = vld [vmem:[#allocation5 + $0x28] sm:$0xff]
    %v84 = vld [vmem:[#allocation5 + $0x30] sm:$0xff]
    %v85 = vld [vmem:[#allocation5 + $0x38] sm:$0xff]
    %v86 = vld [vmem:[#allocation5 + $0x40] sm:$0xff]
    %v87 = vld [vmem:[#allocation5 + $0x48] sm:$0xff]
    %v88 = vld [vmem:[#allocation5 + $0x50] sm:$0xff]
    %v89 = vld [vmem:[#allocation5 + $0x58] sm:$0xff]
    %v90 = vld [vmem:[#allocation5 + $0x60] sm:$0xff]
    %v91 = vld [vmem:[#allocation5 + $0x68] sm:$0xff]
    %v92 = vld [vmem:[#allocation5 + $0x70] sm:$0xff]
    %v93 = vld [vmem:[#allocation5 + $0x78] sm:$0xff]
    %v94 = vld [vmem:[%s2] sm:$0x1]
    %v96 = vlaneseq
    %v97 = vshrl.u32 %v96, 7
    %v98 = vsub.s32 0, %v97
    %v99 = vrot.slane %v94, %v98
    %101 = vmatprep.subr.mxu0 0.0
    %102 = vmatpush1.msra.mxu0 %v78
    %103 = vmatprep.subr.mxu0 0.0
    %104 = vmatpush1.msra.mxu0 %v79
    %105 = vmatprep.subr.mxu0 0.0
    %106 = vmatpush1.msra.mxu0 %v80
    %107 = vmatprep.subr.mxu0 0.0
    %108 = vmatpush1.msra.mxu0 %v81
    %109 = vmatprep.subr.mxu0 0.0
    %110 = vmatpush1.msra.mxu0 %v82
    %111 = vmatprep.subr.mxu0 0.0
    %112 = vmatpush1.msra.mxu0 %v83
    %113 = vmatprep.subr.mxu0 0.0
    %114 = vmatpush1.msra.mxu0 %v84
    %115 = vmatprep.subr.mxu0 0.0
    %116 = vmatpush1.msra.mxu0 %v85
    %117 = vmatprep.subr.mxu0 0.0
    %118 = vmatpush1.msra.mxu0 %v86
    %119 = vmatprep.subr.mxu0 0.0
    %120 = vmatpush1.msra.mxu0 %v87
    %121 = vmatprep.subr.mxu0 0.0
    %122 = vmatpush1.msra.mxu0 %v88
    %123 = vmatprep.subr.mxu0 0.0
    %124 = vmatpush1.msra.mxu0 %v89
    %125 = vmatprep.subr.mxu0 0.0
    %126 = vmatpush1.msra.mxu0 %v90
    %127 = vmatprep.subr.mxu0 0.0
    %128 = vmatpush1.msra.mxu0 %v91
    %129 = vmatprep.subr.mxu0 0.0
    %130 = vmatpush1.msra.mxu0 %v92
    %131 = vmatprep.subr.mxu0 0.0
    %132 = vmatpush1.msra.mxu0 %v93
    %133 = vmatprep.subr.mxu0 0.0
    %134 = vmatpush1.msra.mxu0 0.0
    %135 = vmatprep.subr.mxu0 0.0
    %136 = vmatpush1.msra.mxu0 0.0
    %137 = vmatprep.subr.mxu0 0.0
    %138 = vmatpush1.msra.mxu0 0.0
    %139 = vmatprep.subr.mxu0 0.0
    %140 = vmatpush1.msra.mxu0 0.0
    %141 = vmatprep.subr.mxu0 0.0
    %142 = vmatpush1.msra.mxu0 0.0
    %143 = vmatprep.subr.mxu0 0.0
    %144 = vmatpush1.msra.mxu0 0.0
    %145 = vmatprep.subr.mxu0 0.0
    %146 = vmatpush1.msra.mxu0 0.0
    %147 = vmatprep.subr.mxu0 0.0
    %148 = vmatpush1.msra.mxu0 0.0
    %149 = vmatprep.subr.mxu0 0.0
    %150 = vmatpush1.msra.mxu0 0.0
    %151 = vmatprep.subr.mxu0 0.0
    %152 = vmatpush1.msra.mxu0 0.0
    %153 = vmatprep.subr.mxu0 0.0
    %154 = vmatpush1.msra.mxu0 0.0
    %155 = vmatprep.subr.mxu0 0.0
    %156 = vmatpush1.msra.mxu0 0.0
    %157 = vmatprep.subr.mxu0 0.0
    %158 = vmatpush1.msra.mxu0 0.0
    %159 = vmatprep.subr.mxu0 0.0
    %160 = vmatpush1.msra.mxu0 0.0
    %161 = vmatprep.subr.mxu0 0.0
    %162 = vmatpush1.msra.mxu0 0.0
    %163 = vmatprep.subr.mxu0 0.0
    %164 = vmatpush1.msra.mxu0 0.0
    %165 = vmatprep.mubr.f32.mxu0 0.0
    %166 = vmatmul.mubr.f32.gmra.mrb[0].mxu0 %v62
    %v167 = vpop.f32.mrb[0].mxu0
    %v168 = vadd.f32 %v99, %v167
    %v169 = vpop.f32.mrb[0].mxu0
    %170 = vmatprep.mubr.f32.mxu0 0.0
    %171 = vmatmul.mubr.f32.gmra.mrb[0].mxu0 %v63
    %v172 = vpop.f32.mrb[0].mxu0
    %v173 = vadd.f32 %v99, %v172
    %v174 = vpop.f32.mrb[0].mxu0
    %175 = vmatprep.mubr.f32.mxu0 0.0
    %176 = vmatmul.mubr.f32.gmra.mrb[0].mxu0 %v64
    %v177 = vpop.f32.mrb[0].mxu0
    %v178 = vadd.f32 %v99, %v177
    %v179 = vpop.f32.mrb[0].mxu0
    %180 = vmatprep.mubr.f32.mxu0 0.0
    %181 = vmatmul.mubr.f32.gmra.mrb[0].mxu0 %v65
    %v182 = vpop.f32.mrb[0].mxu0
    %v183 = vadd.f32 %v99, %v182
    %v184 = vpop.f32.mrb[0].mxu0
    %185 = vmatprep.mubr.f32.mxu0 0.0
    %186 = vmatmul.mubr.f32.gmra.mrb[0].mxu0 %v66
    %v187 = vpop.f32.mrb[0].mxu0
    %v188 = vadd.f32 %v99, %v187
    %v189 = vpop.f32.mrb[0].mxu0
    %190 = vmatprep.mubr.f32.mxu0 0.0
    %191 = vmatmul.mubr.f32.gmra.mrb[0].mxu0 %v67
    %v192 = vpop.f32.mrb[0].mxu0
    %v193 = vadd.f32 %v99, %v192
    %v194 = vpop.f32.mrb[0].mxu0
    %195 = vmatprep.mubr.f32.mxu0 0.0
    %196 = vmatmul.mubr.f32.gmra.mrb[0].mxu0 %v68
    %v197 = vpop.f32.mrb[0].mxu0
    %v198 = vadd.f32 %v99, %v197
    %v199 = vpop.f32.mrb[0].mxu0
    %200 = vmatprep.mubr.f32.mxu0 0.0
    %201 = vmatmul.mubr.f32.gmra.mrb[0].mxu0 %v69
    %v202 = vpop.f32.mrb[0].mxu0
    %v203 = vadd.f32 %v99, %v202
    %v204 = vpop.f32.mrb[0].mxu0
    %205 = vmatprep.mubr.f32.mxu0 0.0
    %206 = vmatmul.mubr.f32.gmra.mrb[0].mxu0 %v70
    %v207 = vpop.f32.mrb[0].mxu0
    %v208 = vadd.f32 %v99, %v207
    %v209 = vpop.f32.mrb[0].mxu0
    %210 = vmatprep.mubr.f32.mxu0 0.0
    %211 = vmatmul.mubr.f32.gmra.mrb[0].mxu0 %v71
    %v212 = vpop.f32.mrb[0].mxu0
    %v213 = vadd.f32 %v99, %v212
    %v214 = vpop.f32.mrb[0].mxu0
    %215 = vmatprep.mubr.f32.mxu0 0.0
    %216 = vmatmul.mubr.f32.gmra.mrb[0].mxu0 %v72
    %v217 = vpop.f32.mrb[0].mxu0
    %v218 = vadd.f32 %v99, %v217
    %v219 = vpop.f32.mrb[0].mxu0
    %220 = vmatprep.mubr.f32.mxu0 0.0
    %221 = vmatmul.mubr.f32.gmra.mrb[0].mxu0 %v73
    %v222 = vpop.f32.mrb[0].mxu0
    %v223 = vadd.f32 %v99, %v222
    %v224 = vpop.f32.mrb[0].mxu0
    %225 = vmatprep.mubr.f32.mxu0 0.0
    %226 = vmatmul.mubr.f32.gmra.mrb[0].mxu0 %v74
    %v227 = vpop.f32.mrb[0].mxu0
    %v228 = vadd.f32 %v99, %v227
    %v229 = vpop.f32.mrb[0].mxu0
    %230 = vmatprep.mubr.f32.mxu0 0.0
    %231 = vmatmul.mubr.f32.gmra.mrb[0].mxu0 %v75
    %v232 = vpop.f32.mrb[0].mxu0
    %v233 = vadd.f32 %v99, %v232
    %v234 = vpop.f32.mrb[0].mxu0
    %235 = vmatprep.mubr.f32.mxu0 0.0
    %236 = vmatmul.mubr.f32.gmra.mrb[0].mxu0 %v76
    %v237 = vpop.f32.mrb[0].mxu0
    %v238 = vadd.f32 %v99, %v237
    %v239 = vpop.f32.mrb[0].mxu0
    %240 = vmatprep.mubr.f32.mxu0 0.0
    %241 = vmatmul.mubr.f32.gmra.mrb[0].mxu0 %v77
    %v242 = vpop.f32.mrb[0].mxu0
    %v243 = vadd.f32 %v99, %v242
    %v244 = vpop.f32.mrb[0].mxu0
    %245 = vdwg.mxu0
    %vm246 = vcmp.gt.f32.partialorder %v168, 0.0
    %vm247 = vcmp.gt.f32.partialorder %v173, 0.0
    %vm248 = vcmp.gt.f32.partialorder %v178, 0.0
    %vm249 = vcmp.gt.f32.partialorder %v183, 0.0
    %vm250 = vcmp.gt.f32.partialorder %v188, 0.0
    %vm251 = vcmp.gt.f32.partialorder %v193, 0.0
    %vm252 = vcmp.gt.f32.partialorder %v198, 0.0
    %vm253 = vcmp.gt.f32.partialorder %v203, 0.0
    %vm254 = vcmp.gt.f32.partialorder %v208, 0.0
    %vm255 = vcmp.gt.f32.partialorder %v213, 0.0
    %vm256 = vcmp.gt.f32.partialorder %v218, 0.0
    %vm257 = vcmp.gt.f32.partialorder %v223, 0.0
    %vm258 = vcmp.gt.f32.partialorder %v228, 0.0
    %vm259 = vcmp.gt.f32.partialorder %v233, 0.0
    %vm260 = vcmp.gt.f32.partialorder %v238, 0.0
    %vm261 = vcmp.gt.f32.partialorder %v243, 0.0
    %v262 = vmul.f32 %v168, 0.01
    %v263 = vmul.f32 %v173, 0.01
    %v264 = vmul.f32 %v178, 0.01
    %v265 = vmul.f32 %v183, 0.01
    %v266 = vmul.f32 %v188, 0.01
    %v267 = vmul.f32 %v193, 0.01
    %v268 = vmul.f32 %v198, 0.01
    %v269 = vmul.f32 %v203, 0.01
    %v270 = vmul.f32 %v208, 0.01
    %v271 = vmul.f32 %v213, 0.01
    %v272 = vmul.f32 %v218, 0.01
    %v273 = vmul.f32 %v223, 0.01
    %v274 = vmul.f32 %v228, 0.01
    %v275 = vmul.f32 %v233, 0.01
    %v276 = vmul.f32 %v238, 0.01
    %v277 = vmul.f32 %v243, 0.01
    %v278 = vsel %vm246, %v168, %v262
    %v279 = vsel %vm247, %v173, %v263
    %v280 = vsel %vm248, %v178, %v264
    %v281 = vsel %vm249, %v183, %v265
    %v282 = vsel %vm250, %v188, %v266
    %v283 = vsel %vm251, %v193, %v267
    %v284 = vsel %vm252, %v198, %v268
    %v285 = vsel %vm253, %v203, %v269
    %v286 = vsel %vm254, %v208, %v270
    %v287 = vsel %vm255, %v213, %v271
    %v288 = vsel %vm256, %v218, %v272
    %v289 = vsel %vm257, %v223, %v273
    %v290 = vsel %vm258, %v228, %v274
    %v291 = vsel %vm259, %v233, %v275
    %v292 = vsel %vm260, %v238, %v276
    %v293 = vsel %vm261, %v243, %v277
    %v294 = vld [vmem:[#allocation7] sm:$0xff]
    %v295 = vld [vmem:[#allocation7 + $0x8] sm:$0xff]
    %v296 = vld [vmem:[#allocation7 + $0x10] sm:$0xff]
    %v297 = vld [vmem:[#allocation7 + $0x18] sm:$0xff]
    %v298 = vld [vmem:[#allocation7 + $0x20] sm:$0xff]
    %v299 = vld [vmem:[#allocation7 + $0x28] sm:$0xff]
    %v300 = vld [vmem:[#allocation7 + $0x30] sm:$0xff]
    %v301 = vld [vmem:[#allocation7 + $0x38] sm:$0xff]
    %v302 = vld [vmem:[#allocation7 + $0x40] sm:$0xff]
    %v303 = vld [vmem:[#allocation7 + $0x48] sm:$0xff]
    %v304 = vld [vmem:[#allocation7 + $0x50] sm:$0xff]
    %v305 = vld [vmem:[#allocation7 + $0x58] sm:$0xff]
    %v306 = vld [vmem:[#allocation7 + $0x60] sm:$0xff]
    %v307 = vld [vmem:[#allocation7 + $0x68] sm:$0xff]
    %v308 = vld [vmem:[#allocation7 + $0x70] sm:$0xff]
    %v309 = vld [vmem:[#allocation7 + $0x78] sm:$0xff]
    %v310 = vld [vmem:[%s4] sm:$0x1]
    %v312 = vlaneseq
    %v313 = vshrl.u32 %v312, 7
    %v314 = vsub.s32 0, %v313
    %v315 = vrot.slane %v310, %v314
    %317 = vmatprep.subr.mxu0 0.0
    %318 = vmatpush1.msra.mxu0 %v294
    %319 = vmatprep.subr.mxu0 0.0
    %320 = vmatpush1.msra.mxu0 %v295
    %321 = vmatprep.subr.mxu0 0.0
    %322 = vmatpush1.msra.mxu0 %v296
    %323 = vmatprep.subr.mxu0 0.0
    %324 = vmatpush1.msra.mxu0 %v297
    %325 = vmatprep.subr.mxu0 0.0
    %326 = vmatpush1.msra.mxu0 %v298
    %327 = vmatprep.subr.mxu0 0.0
    %328 = vmatpush1.msra.mxu0 %v299
    %329 = vmatprep.subr.mxu0 0.0
    %330 = vmatpush1.msra.mxu0 %v300
    %331 = vmatprep.subr.mxu0 0.0
    %332 = vmatpush1.msra.mxu0 %v301
    %333 = vmatprep.subr.mxu0 0.0
    %334 = vmatpush1.msra.mxu0 %v302
    %335 = vmatprep.subr.mxu0 0.0
    %336 = vmatpush1.msra.mxu0 %v303
    %337 = vmatprep.subr.mxu0 0.0
    %338 = vmatpush1.msra.mxu0 %v304
    %339 = vmatprep.subr.mxu0 0.0
    %340 = vmatpush1.msra.mxu0 %v305
    %341 = vmatprep.subr.mxu0 0.0
    %342 = vmatpush1.msra.mxu0 %v306
    %343 = vmatprep.subr.mxu0 0.0
    %344 = vmatpush1.msra.mxu0 %v307
    %345 = vmatprep.subr.mxu0 0.0
    %346 = vmatpush1.msra.mxu0 %v308
    %347 = vmatprep.subr.mxu0 0.0
    %348 = vmatpush1.msra.mxu0 %v309
    %349 = vmatprep.subr.mxu0 0.0
    %350 = vmatpush1.msra.mxu0 0.0
    %351 = vmatprep.subr.mxu0 0.0
    %352 = vmatpush1.msra.mxu0 0.0
    %353 = vmatprep.subr.mxu0 0.0
    %354 = vmatpush1.msra.mxu0 0.0
    %355 = vmatprep.subr.mxu0 0.0
    %356 = vmatpush1.msra.mxu0 0.0
    %357 = vmatprep.subr.mxu0 0.0
    %358 = vmatpush1.msra.mxu0 0.0
    %359 = vmatprep.subr.mxu0 0.0
    %360 = vmatpush1.msra.mxu0 0.0
    %361 = vmatprep.subr.mxu0 0.0
    %362 = vmatpush1.msra.mxu0 0.0
    %363 = vmatprep.subr.mxu0 0.0
    %364 = vmatpush1.msra.mxu0 0.0
    %365 = vmatprep.subr.mxu0 0.0
    %366 = vmatpush1.msra.mxu0 0.0
    %367 = vmatprep.subr.mxu0 0.0
    %368 = vmatpush1.msra.mxu0 0.0
    %369 = vmatprep.subr.mxu0 0.0
    %370 = vmatpush1.msra.mxu0 0.0
    %371 = vmatprep.subr.mxu0 0.0
    %372 = vmatpush1.msra.mxu0 0.0
    %373 = vmatprep.subr.mxu0 0.0
    %374 = vmatpush1.msra.mxu0 0.0
    %375 = vmatprep.subr.mxu0 0.0
    %376 = vmatpush1.msra.mxu0 0.0
    %377 = vmatprep.subr.mxu0 0.0
    %378 = vmatpush1.msra.mxu0 0.0
    %379 = vmatprep.subr.mxu0 0.0
    %380 = vmatpush1.msra.mxu0 0.0
    %381 = vmatprep.mubr.f32.mxu0 0.0
    %382 = vmatmul.mubr.f32.gmra.mrb[0].mxu0 %v278
    %v383 = vpop.f32.mrb[0].mxu0
    %v384 = vadd.f32 %v315, %v383
    %v385 = vpop.f32.mrb[0].mxu0
    %386 = vmatprep.mubr.f32.mxu0 0.0
    %387 = vmatmul.mubr.f32.gmra.mrb[0].mxu0 %v279
    %v388 = vpop.f32.mrb[0].mxu0
    %v389 = vadd.f32 %v315, %v388
    %v390 = vpop.f32.mrb[0].mxu0
    %391 = vmatprep.mubr.f32.mxu0 0.0
    %392 = vmatmul.mubr.f32.gmra.mrb[0].mxu0 %v280
    %v393 = vpop.f32.mrb[0].mxu0
    %v394 = vadd.f32 %v315, %v393
    %v395 = vpop.f32.mrb[0].mxu0
    %396 = vmatprep.mubr.f32.mxu0 0.0
    %397 = vmatmul.mubr.f32.gmra.mrb[0].mxu0 %v281
    %v398 = vpop.f32.mrb[0].mxu0
    %v399 = vadd.f32 %v315, %v398
    %v400 = vpop.f32.mrb[0].mxu0
    %401 = vmatprep.mubr.f32.mxu0 0.0
    %402 = vmatmul.mubr.f32.gmra.mrb[0].mxu0 %v282
    %v403 = vpop.f32.mrb[0].mxu0
    %v404 = vadd.f32 %v315, %v403
    %v405 = vpop.f32.mrb[0].mxu0
    %406 = vmatprep.mubr.f32.mxu0 0.0
    %407 = vmatmul.mubr.f32.gmra.mrb[0].mxu0 %v283
    %v408 = vpop.f32.mrb[0].mxu0
    %v409 = vadd.f32 %v315, %v408
    %v410 = vpop.f32.mrb[0].mxu0
    %411 = vmatprep.mubr.f32.mxu0 0.0
    %412 = vmatmul.mubr.f32.gmra.mrb[0].mxu0 %v284
    %v413 = vpop.f32.mrb[0].mxu0
    %v414 = vadd.f32 %v315, %v413
    %v415 = vpop.f32.mrb[0].mxu0
    %416 = vmatprep.mubr.f32.mxu0 0.0
    %417 = vmatmul.mubr.f32.gmra.mrb[0].mxu0 %v285
    %v418 = vpop.f32.mrb[0].mxu0
    %v419 = vadd.f32 %v315, %v418
    %v420 = vpop.f32.mrb[0].mxu0
    %421 = vmatprep.mubr.f32.mxu0 0.0
    %422 = vmatmul.mubr.f32.gmra.mrb[0].mxu0 %v286
    %v423 = vpop.f32.mrb[0].mxu0
    %v424 = vadd.f32 %v315, %v423
    %v425 = vpop.f32.mrb[0].mxu0
    %426 = vmatprep.mubr.f32.mxu0 0.0
    %427 = vmatmul.mubr.f32.gmra.mrb[0].mxu0 %v287
    %v428 = vpop.f32.mrb[0].mxu0
    %v429 = vadd.f32 %v315, %v428
    %v430 = vpop.f32.mrb[0].mxu0
    %431 = vmatprep.mubr.f32.mxu0 0.0
    %432 = vmatmul.mubr.f32.gmra.mrb[0].mxu0 %v288
    %v433 = vpop.f32.mrb[0].mxu0
    %v434 = vadd.f32 %v315, %v433
    %v435 = vpop.f32.mrb[0].mxu0
    %436 = vmatprep.mubr.f32.mxu0 0.0
    %437 = vmatmul.mubr.f32.gmra.mrb[0].mxu0 %v289
    %v438 = vpop.f32.mrb[0].mxu0
    %v439 = vadd.f32 %v315, %v438
    %v440 = vpop.f32.mrb[0].mxu0
    %441 = vmatprep.mubr.f32.mxu0 0.0
    %442 = vmatmul.mubr.f32.gmra.mrb[0].mxu0 %v290
    %v443 = vpop.f32.mrb[0].mxu0
    %v444 = vadd.f32 %v315, %v443
    %v445 = vpop.f32.mrb[0].mxu0
    %446 = vmatprep.mubr.f32.mxu0 0.0
    %447 = vmatmul.mubr.f32.gmra.mrb[0].mxu0 %v291
    %v448 = vpop.f32.mrb[0].mxu0
    %v449 = vadd.f32 %v315, %v448
    %v450 = vpop.f32.mrb[0].mxu0
    %451 = vmatprep.mubr.f32.mxu0 0.0
    %452 = vmatmul.mubr.f32.gmra.mrb[0].mxu0 %v292
    %v453 = vpop.f32.mrb[0].mxu0
    %v454 = vadd.f32 %v315, %v453
    %v455 = vpop.f32.mrb[0].mxu0
    %456 = vmatprep.mubr.f32.mxu0 0.0
    %457 = vmatmul.mubr.f32.gmra.mrb[0].mxu0 %v293
    %v458 = vpop.f32.mrb[0].mxu0
    %v459 = vadd.f32 %v315, %v458
    %v460 = vpop.f32.mrb[0].mxu0
    %461 = vdwg.mxu0
    %v462 = vmul.f32 %v384, 0.5
    %v463 = vmul.f32 %v389, 0.5
    %v464 = vmul.f32 %v394, 0.5
    %v465 = vmul.f32 %v399, 0.5
    %v466 = vmul.f32 %v404, 0.5
    %v467 = vmul.f32 %v409, 0.5
    %v468 = vmul.f32 %v414, 0.5
    %v469 = vmul.f32 %v419, 0.5
    %v470 = vmul.f32 %v424, 0.5
    %v471 = vmul.f32 %v429, 0.5
    %v472 = vmul.f32 %v434, 0.5
    %v473 = vmul.f32 %v439, 0.5
    %v474 = vmul.f32 %v444, 0.5
    %v475 = vmul.f32 %v449, 0.5
    %v476 = vmul.f32 %v454, 0.5
    %v477 = vmul.f32 %v459, 0.5
    %v478 = vtanh.pop %v462
    %v479 = vtanh.pop %v463
    %v480 = vtanh.pop %v464
    %v481 = vtanh.pop %v465
    %v482 = vtanh.pop %v466
    %v483 = vtanh.pop %v467
    %v484 = vtanh.pop %v468
    %v485 = vtanh.pop %v469
    %v486 = vtanh.pop %v470
    %v487 = vtanh.pop %v471
    %v488 = vtanh.pop %v472
    %v489 = vtanh.pop %v473
    %v490 = vtanh.pop %v474
    %v491 = vtanh.pop %v475
    %v492 = vtanh.pop %v476
    %v493 = vtanh.pop %v477
    %v494 = vmul.f32 %v478, 0.5
    %v495 = vmul.f32 %v479, 0.5
    %v496 = vmul.f32 %v480, 0.5
    %v497 = vmul.f32 %v481, 0.5
    %v498 = vmul.f32 %v482, 0.5
    %v499 = vmul.f32 %v483, 0.5
    %v500 = vmul.f32 %v484, 0.5
    %v501 = vmul.f32 %v485, 0.5
    %v502 = vmul.f32 %v486, 0.5
    %v503 = vmul.f32 %v487, 0.5
    %v504 = vmul.f32 %v488, 0.5
    %v505 = vmul.f32 %v489, 0.5
    %v506 = vmul.f32 %v490, 0.5
    %v507 = vmul.f32 %v491, 0.5
    %v508 = vmul.f32 %v492, 0.5
    %v509 = vmul.f32 %v493, 0.5
    %v510 = vadd.f32 %v494, 0.5
    %v511 = vadd.f32 %v495, 0.5
    %v512 = vadd.f32 %v496, 0.5
    %v513 = vadd.f32 %v497, 0.5
    %v514 = vadd.f32 %v498, 0.5
    %v515 = vadd.f32 %v499, 0.5
    %v516 = vadd.f32 %v500, 0.5
    %v517 = vadd.f32 %v501, 0.5
    %v518 = vadd.f32 %v502, 0.5
    %v519 = vadd.f32 %v503, 0.5
    %v520 = vadd.f32 %v504, 0.5
    %v521 = vadd.f32 %v505, 0.5
    %v522 = vadd.f32 %v506, 0.5
    %v523 = vadd.f32 %v507, 0.5
    %v524 = vadd.f32 %v508, 0.5
    %v525 = vadd.f32 %v509, 0.5
    %526 = vst [vmem:[#allocation8] sm:$0xff] %v510
    %527 = vst [vmem:[#allocation8 + $0x8] sm:$0xff] %v511
    %528 = vst [vmem:[#allocation8 + $0x10] sm:$0xff] %v512
    %529 = vst [vmem:[#allocation8 + $0x18] sm:$0xff] %v513
    %530 = vst [vmem:[#allocation8 + $0x20] sm:$0xff] %v514
    %531 = vst [vmem:[#allocation8 + $0x28] sm:$0xff] %v515
    %532 = vst [vmem:[#allocation8 + $0x30] sm:$0xff] %v516
    %533 = vst [vmem:[#allocation8 + $0x38] sm:$0xff] %v517
    %534 = vst [vmem:[#allocation8 + $0x40] sm:$0xff] %v518
    %535 = vst [vmem:[#allocation8 + $0x48] sm:$0xff] %v519
    %536 = vst [vmem:[#allocation8 + $0x50] sm:$0xff] %v520
    %537 = vst [vmem:[#allocation8 + $0x58] sm:$0xff] %v521
    %538 = vst [vmem:[#allocation8 + $0x60] sm:$0xff] %v522
    %539 = vst [vmem:[#allocation8 + $0x68] sm:$0xff] %v523
    %540 = vst [vmem:[#allocation8 + $0x70] sm:$0xff] %v524
    %541 = vst [vmem:[#allocation8 + $0x78] sm:$0xff] %v525
    // Predicated region
    $region34: #{tpu_custom_call.1} parent=1 // pred_check
      _
    $region35: #{tpu_custom_call.1} parent=1 // pred_check_branch
      %543 = sbr.rel (0) target = $region37
    $region36: #{tpu_custom_call.1} parent=1 // pred_region
      %s545 = ssub.s32 2048, 2048
      %546 = vsyncadd [#allocation4], %s545
      %s547 = sshll.u32 [#allocation8], 4
      %s548 = int_to_ptr.vmem [resolvable:$true] %s547
      %553 = dma.vmem_to_hbm [thread:$0]  %s548, 2048, %s5, [#allocation4], 128, 128, 8
    $region37: #{tpu_custom_call.1} parent=1 // pred_fallthru
      _
    // Predicated region
    $region38: #{tpu_custom_call.1} parent=1 // pred_check
      _
    $region39: #{tpu_custom_call.1} parent=1 // pred_check_branch
      %555 = sbr.rel (0) target = $region41
    $region40: #{tpu_custom_call.1} parent=1 // pred_region
      %556 = dma.done [#allocation4], 2048
    $region41: #{tpu_custom_call.1} parent=1 // pred_fallthru
      _
    %557 = vsyncpa [#allocation3], 1
    %558 = vsyncpa [#allocation6], 1
    %559 = vsyncpa [#allocation4], 1

</llo_original>
